<compile_context>
chip_gen: v5e
topology: v5e:2x2
jax: 0.10.0
libtpu: 0.0.40
codegen_flags: <defaults>
</compile_context>

<pallas_src>
import jax
import jax.numpy as jnp
import numpy as np
from jax.experimental import pallas as pl
from jax.experimental.pallas import tpu as pltpu

NUM_CLASS = 2          # config.num_class (binary DTI classification)
CONFIG_B = 0.05        # config.b (flooding level)
EPS = 1e-12
INV_LN2 = 1.4426950408889634  # 1 / ln(2), for log2 via natural log


def tim_loss_kernel(logits_ref, labels_ref, out_ref):
    # logits_ref: [C, N] f32 in VMEM (class axis on sublanes, batch axis on lanes)
    # labels_ref: [1, N] int32 in VMEM
    # out_ref:    [1, 1] f32 in SMEM (scalar result)
    t = logits_ref[...]
    labels = labels_ref[...]
    C, N = t.shape
    inv_n = 1.0 / N

    # Numerically stable softmax / log-softmax over the class axis (sublane reduce).
    m = jnp.max(t, axis=0, keepdims=True)                 # [1, N]
    shifted = t - m
    exps = jnp.exp(shifted)                               # [C, N]
    sumexp = jnp.sum(exps, axis=0, keepdims=True)         # [1, N]
    logprobs = shifted - jnp.log(sumexp)                  # [C, N]
    # EUP reciprocal instead of an f32 divide (use approx=True when bit-closeness
    # to the reference does not matter).
    inv_sumexp = pl.reciprocal(sumexp, approx=False)      # [1, N]
    probs = exps * inv_sumexp                             # [C, N]

    # Cross-entropy: compare+select on the VPU, single full-array reduction.
    # NOTE: out-of-range labels silently contribute 0 here, whereas PyTorch's
    # CrossEntropyLoss would raise.
    class_iota = jax.lax.broadcasted_iota(jnp.int32, (C, N), 0)
    ce = -jnp.sum(jnp.where(class_iota == labels, logprobs, 0.0)) * inv_n

    # Flooding: loss = |ce - b| + b
    loss = jnp.abs(ce - CONFIG_B) + CONFIG_B

    # Marginal entropy (base-2) of the batch-mean predicted distribution.
    mean_p = jnp.sum(probs, axis=1, keepdims=True) * inv_n          # [C, 1]
    ent = -jnp.sum(mean_p * (jnp.log(mean_p + EPS) * INV_LN2))

    # Conditional entropy (nats), reusing log-softmax: log(p) vs log(p + 1e-12)
    # differs by ~1e-12 for any non-degenerate prob, well inside tolerance.
    cond = -jnp.sum(probs * logprobs) * inv_n

    out_ref[0, 0] = loss + ent - cond


@jax.jit
def tim_loss_forward(logits, labels):
    N, C = logits.shape
    # Lane-dense layout: batch N (multiple of 128) on lanes, classes on sublanes.
    # allow_input_fusion lets XLA fuse this transpose into the pallas_call operand
    # instead of emitting a separate HLO + HBM round trip.
    logits_t = jnp.transpose(logits)                 # [C, N]
    labels_2d = labels.reshape(1, N).astype(jnp.int32)

    out = pl.pallas_call(
        tim_loss_kernel,
        out_shape=jax.ShapeDtypeStruct((1, 1), jnp.float32),
        in_specs=[
            pl.BlockSpec(memory_space=pltpu.MemorySpace.VMEM),
            pl.BlockSpec(memory_space=pltpu.MemorySpace.VMEM),
        ],
        out_specs=pl.BlockSpec(memory_space=pltpu.MemorySpace.SMEM),
        compiler_params=pltpu.CompilerParams(
            allow_input_fusion=[True, False]),
    )(logits_t, labels_2d)
    return out[0, 0]


def reference_forward(logits, labels):
    # Pure-JAX reference mirroring the PyTorch forward exactly (incl. the +1e-12).
    N, C = logits.shape
    logprobs = jax.nn.log_softmax(logits, axis=1)
    ce = -jnp.mean(logprobs[jnp.arange(N), labels])
    loss = jnp.abs(ce - CONFIG_B) + CONFIG_B
    probs = jax.nn.softmax(logits, axis=1)
    mean_p = jnp.mean(probs, axis=0)
    ent = -jnp.sum(mean_p * jnp.log2(mean_p + EPS))
    cond = -jnp.mean(jnp.sum(probs * jnp.log(probs + EPS), axis=1))
    return loss + ent - cond


if __name__ == "__main__":
    key = jax.random.PRNGKey(0)
    k_logits, k_labels = jax.random.split(key, 2)

    N, C = 128, NUM_CLASS  # small batch of logits, shape consistent with the module

    logits = jax.random.normal(k_logits, (N, C), dtype=jnp.float32)
    labels = jax.random.randint(k_labels, (N,), 0, C, dtype=jnp.int32)

    out = tim_loss_forward(logits, labels)
    out = jax.block_until_ready(out)

    ref = reference_forward(logits, labels)
    np.testing.assert_allclose(np.asarray(out), np.asarray(ref), rtol=1e-5, atol=1e-5)

    print("KERNEL_OK")
</pallas_src>

<mosaic_0001>
module attributes {stable_mosaic.version = 11 : i64} {
  func.func @tim_loss_kernel(%arg0: memref<2x128xf32, #tpu.memory_space<vmem>>, %arg1: memref<1x128xi32, #tpu.memory_space<vmem>>, %arg2: memref<1x1xf32, #tpu.memory_space<smem>>) attributes {dimension_semantics = [], scalar_prefetch = 0 : i64, scratch_operands = 0 : i64, tpu.core_type = #tpu.core_type<tc>} {
    %c0 = arith.constant 0 : index
    %c0_0 = arith.constant 0 : index
    %0 = vector.load %arg0[%c0, %c0_0] : memref<2x128xf32, #tpu.memory_space<vmem>>, vector<2x128xf32>
    %c0_1 = arith.constant 0 : index
    %c0_2 = arith.constant 0 : index
    %1 = vector.load %arg1[%c0_1, %c0_2] : memref<1x128xi32, #tpu.memory_space<vmem>>, vector<1x128xi32>
    %cst = arith.constant dense<0xFF800000> : vector<128xf32>
    %2 = vector.multi_reduction <maximumf>, %0, %cst [0] : vector<2x128xf32> to vector<128xf32>
    %3 = vector.shape_cast %2 : vector<128xf32> to vector<1x128xf32>
    %4 = vector.broadcast %3 : vector<1x128xf32> to vector<2x128xf32>
    %5 = arith.subf %0, %4 : vector<2x128xf32>
    %6 = math.exp %5 : vector<2x128xf32>
    %cst_3 = arith.constant dense<0.000000e+00> : vector<128xf32>
    %7 = vector.multi_reduction <add>, %6, %cst_3 [0] : vector<2x128xf32> to vector<128xf32>
    %8 = vector.shape_cast %7 : vector<128xf32> to vector<1x128xf32>
    %9 = math.log %8 : vector<1x128xf32>
    %10 = vector.broadcast %9 : vector<1x128xf32> to vector<2x128xf32>
    %11 = arith.subf %5, %10 : vector<2x128xf32>
    %12 = tpu.reciprocal %8 : vector<1x128xf32> -> vector<1x128xf32>
    %13 = vector.broadcast %12 : vector<1x128xf32> to vector<2x128xf32>
    %14 = arith.mulf %6, %13 : vector<2x128xf32>
    %15 = tpu.iota {dimensions = array<i32: 0>} : vector<2x128xi32>
    %16 = vector.broadcast %1 : vector<1x128xi32> to vector<2x128xi32>
    %17 = arith.cmpi eq, %15, %16 : vector<2x128xi32>
    %cst_4 = arith.constant 0.000000e+00 : f32
    %18 = vector.broadcast %cst_4 : f32 to vector<2x128xf32>
    %19 = arith.select %17, %11, %18 : vector<2x128xi1>, vector<2x128xf32>
    %20 = vector.shape_cast %19 : vector<2x128xf32> to vector<1x2x128xf32>
    %cst_5 = arith.constant dense<0.000000e+00> : vector<1xf32>
    %21 = vector.multi_reduction <add>, %20, %cst_5 [1, 2] : vector<1x2x128xf32> to vector<1xf32>
    %22 = vector.shape_cast %21 : vector<1xf32> to vector<1x1x1xf32>
    %23 = vector.extract %22[0, 0, 0] : f32 from vector<1x1x1xf32>
    %cst_6 = arith.constant 0.000000e+00 : f32
    %24 = arith.subf %cst_6, %23 : f32
    %cst_7 = arith.constant 7.812500e-03 : f32
    %25 = arith.mulf %24, %cst_7 : f32
    %cst_8 = arith.constant 5.000000e-02 : f32
    %26 = arith.subf %25, %cst_8 : f32
    %27 = math.absf %26 : f32
    %cst_9 = arith.constant 5.000000e-02 : f32
    %28 = arith.addf %27, %cst_9 : f32
    %cst_10 = arith.constant dense<0.000000e+00> : vector<2xf32>
    %29 = vector.multi_reduction <add>, %14, %cst_10 [1] : vector<2x128xf32> to vector<2xf32>
    %30 = vector.shape_cast %29 : vector<2xf32> to vector<2x1xf32>
    %cst_11 = arith.constant 7.812500e-03 : f32
    %31 = vector.broadcast %cst_11 : f32 to vector<2x1xf32>
    %32 = arith.mulf %30, %31 : vector<2x1xf32>
    %cst_12 = arith.constant 9.99999996E-13 : f32
    %33 = vector.broadcast %cst_12 : f32 to vector<2x1xf32>
    %34 = arith.addf %32, %33 : vector<2x1xf32>
    %35 = math.log %34 : vector<2x1xf32>
    %cst_13 = arith.constant 1.44269502 : f32
    %36 = vector.broadcast %cst_13 : f32 to vector<2x1xf32>
    %37 = arith.mulf %35, %36 : vector<2x1xf32>
    %38 = arith.mulf %32, %37 : vector<2x1xf32>
    %39 = vector.shape_cast %38 : vector<2x1xf32> to vector<1x2x1xf32>
    %cst_14 = arith.constant dense<0.000000e+00> : vector<1xf32>
    %40 = vector.multi_reduction <add>, %39, %cst_14 [1, 2] : vector<1x2x1xf32> to vector<1xf32>
    %41 = vector.shape_cast %40 : vector<1xf32> to vector<1x1x1xf32>
    %42 = vector.extract %41[0, 0, 0] : f32 from vector<1x1x1xf32>
    %cst_15 = arith.constant 0.000000e+00 : f32
    %43 = arith.subf %cst_15, %42 : f32
    %44 = arith.mulf %14, %11 : vector<2x128xf32>
    %45 = vector.shape_cast %44 : vector<2x128xf32> to vector<1x2x128xf32>
    %cst_16 = arith.constant dense<0.000000e+00> : vector<1xf32>
    %46 = vector.multi_reduction <add>, %45, %cst_16 [1, 2] : vector<1x2x128xf32> to vector<1xf32>
    %47 = vector.shape_cast %46 : vector<1xf32> to vector<1x1x1xf32>
    %48 = vector.extract %47[0, 0, 0] : f32 from vector<1x1x1xf32>
    %cst_17 = arith.constant 0.000000e+00 : f32
    %49 = arith.subf %cst_17, %48 : f32
    %cst_18 = arith.constant 7.812500e-03 : f32
    %50 = arith.mulf %49, %cst_18 : f32
    %51 = arith.addf %28, %43 : f32
    %52 = arith.subf %51, %50 : f32
    %c0_19 = arith.constant 0 : index
    %c0_20 = arith.constant 0 : index
    %53 = memref.load %arg2[%c0_19, %c0_20] : memref<1x1xf32, #tpu.memory_space<smem>>
    memref.store %52, %arg2[%c0_19, %c0_20] : memref<1x1xf32, #tpu.memory_space<smem>>
    return
  }
}

</mosaic_0001>

<llo_original>
// kernel: tim_loss_forward.2
$region0: #{tim_loss_forward.2}
  #allocation0 [shape = 'u32[]', space=smem, size = 0x4, offset = 0x4, fixed_abs, tag = 'smem constant byte address 0x4 - core index']
  #allocation1 [shape = 'u32[72,128]{1,0:T(1,128)}', space=vmem, size = 0x9000, scoped, tag = 'internal scratch']
  %s0 = inlined_call_operand.vmem [shape: s32[1,128], index: 0, kind: input, shape index: {}]
  %s1 = inlined_call_operand.vmem [shape: f32[128,2], index: 1, kind: input, shape index: {}]
  %s2 = inlined_call_operand.hbm [shape: f32[1,1], index: 2, kind: output, shape index: {}]
  %s3 = sld [smem:[#allocation0]]
  $region18: #{tim_loss_forward.2} parent=0
    _
  %s5 = ssub.s32 1, %s3
  %s6 = scalar_select 0, %s5, %s3
  $region1: #{tim_loss_forward.2} parent=0
    #allocation2 [shape = 'u8[512]{0}', space=smem, size = 0x200, scoped, tag = 'output window, operand 0, single buffered']
    #allocation3 [shape = 's32[1]{0}', space=sflag, size = 0x4, scoped, tag = 'scoped memory for tim_loss_forward.2']
    #allocation4 [shape = 'u8[1024]{0}', space=vmem, size = 0x400, dematerialized = true, scoped, tag = 'FusionAdapter Buffer %fusion.1 = f32[2,128]{1,0:T(2,128)} fusion(%param_1.1), kind=kLoop, calls=%fused_computation.1.clone, metadata={op_name="jit(tim_loss_forward)/transpose" stack_frame_id=7}']
    %7 = vsyncpa [#allocation3], 0
    // Predicated region
    $region2: #{tim_loss_forward.2} parent=1 // pred_check
      _
    $region3: #{tim_loss_forward.2} parent=1 // pred_check_branch
      %9 = sbr.rel (0) target = $region5
    $region4: #{tim_loss_forward.2} parent=1 // pred_region
      _
    $region5: #{tim_loss_forward.2} parent=1 // pred_fallthru
      _
    // Predicated region
    $region6: #{tim_loss_forward.2} parent=1 // pred_check
      _
    $region7: #{tim_loss_forward.2} parent=1 // pred_check_branch
      %11 = sbr.rel (0) target = $region9
    $region8: #{tim_loss_forward.2} parent=1 // pred_region
      _
    $region9: #{tim_loss_forward.2} parent=1 // pred_fallthru
      _
    %v12 = vld [vmem:[%s1] sm:$0x3]
    %s14 = ssub.s32 4, 1
    %15 = vst [vmem:[#allocation4] sm:%s14] %v12
    %v16 = vld [vmem:[#allocation4] sm:$0x3]
    %v17 = vld [vmem:[%s0] sm:$0x1]
    %vm18 = vcmask 1041408
    %v19 = vsel %vm18, %v16, -inf
    %v20 = vrot.slane %v19, 4
    %v21 = vmax.f32 %v19, %v20
    %v22 = vrot.slane %v21, 2
    %v23 = vmax.f32 %v21, %v22
    %v24 = vrot.slane %v23, 1
    %v25 = vmax.f32 %v23, %v24
    %v26 = vsub.f32 %v16, %v25
    %v27 = vmul.f32 %v26, 1.442695
    %v28 = vpow.pop %v27
    %v29 = vsel %vm18, %v28, 0.0
    %v30 = vrot.slane %v29, 4
    %v31 = vadd.f32 %v29, %v30
    %v32 = vrot.slane %v31, 2
    %v33 = vadd.f32 %v31, %v32
    %v34 = vrot.slane %v33, 1
    %v35 = vadd.f32 %v33, %v34
    %v36 = vlog2.pop %v35
    %v37 = vmul.f32 %v36, 0.6931472
    %v38 = vsub.f32 %v26, %v37
    %v39 = vrcp.pop %v35
    %v40 = vmul.f32 %v35, %v39
    %v41 = vsub.f32 1.0, %v40
    %v42 = vmul.f32 %v39, %v41
    %v43 = vadd.f32 %v39, %v42
    %vm44 = vweird.f32 %v35
    %vm45 = vweird.f32 %v39
    %vm46 = vmor %vm44, %vm45
    %v47 = vsel %vm46, %v39, %v43
    %v48 = vand.u32 2147483647, %v35
    %vm49 = vcmp.eq.f32.partialorder %v48, 8.507059e+37
    %v50 = vand.u32 %v35, 2147483648
    %v51 = vor.u32 1.1754944e-38, %v50
    %v52 = vsel %vm49, %v51, %v47
    %v53 = vmul.f32 %v28, %v52
    %v54 = vlaneseq
    %v55 = vshrl.u32 %v54, 7
    %v56 = vperm.slane %v17, 0
    %vm57 = vcmp.eq.s32.totalorder %v55, %v56
    %v58 = vsel %vm57, %v38, 0.0
    %v59 = vsel %vm18, %v58, 0.0
    %60 = vadd.xlane.f32.xlu0 %v59
    %v61 = vpop.xlane.xlu0 %60
    %v62 = vrot.slane %v61, 4
    %v63 = vadd.f32 %v61, %v62
    %v64 = vrot.slane %v63, 2
    %v65 = vadd.f32 %v63, %v64
    %v66 = vrot.slane %v65, 1
    %v67 = vadd.f32 %v65, %v66
    %s68 = vtos %v67
    %s69 = ssub.f32 0.0, %s68
    %s70 = smul.f32 %s69, 0.0078125
    %s71 = ssub.f32 %s70, 0.05
    %s72 = sand.u32 2147483647, %s71
    %s73 = sadd.f32 %s72, 0.05
    %v74 = vsel %vm18, %v53, 0.0
    %75 = vadd.xlane.f32.xlu0 %v74
    %v76 = vpop.xlane.xlu0 %75
    %v77 = vmul.f32 %v76, 0.0078125
    %v78 = vadd.f32 %v77, 1e-12
    %v79 = vlog2.pop %v78
    %v80 = vmul.f32 %v79, 0.6931472
    %v81 = vmul.f32 %v80, 1.442695
    %v82 = vmul.f32 %v77, %v81
    %vm83 = vcmask 1024
    %v84 = vsel %vm83, %v82, 0.0
    %85 = vadd.xlane.f32.xlu0 %v84
    %v86 = vpop.xlane.xlu0 %85
    %v87 = vrot.slane %v86, 4
    %v88 = vadd.f32 %v86, %v87
    %v89 = vrot.slane %v88, 2
    %v90 = vadd.f32 %v88, %v89
    %v91 = vrot.slane %v90, 1
    %v92 = vadd.f32 %v90, %v91
    %s93 = vtos %v92
    %s94 = ssub.f32 0.0, %s93
    %v95 = vmul.f32 %v53, %v38
    %v96 = vsel %vm18, %v95, 0.0
    %97 = vadd.xlane.f32.xlu0 %v96
    %v98 = vpop.xlane.xlu0 %97
    %v99 = vrot.slane %v98, 4
    %v100 = vadd.f32 %v98, %v99
    %v101 = vrot.slane %v100, 2
    %v102 = vadd.f32 %v100, %v101
    %v103 = vrot.slane %v102, 1
    %v104 = vadd.f32 %v102, %v103
    %s105 = vtos %v104
    %s106 = ssub.f32 0.0, %s105
    %s107 = smul.f32 %s106, 0.0078125
    %s108 = sadd.f32 %s73, %s94
    %s109 = ssub.f32 %s108, %s107
    %s110 = scalar_lea.smem [#allocation2], 0
    %111 = sst [smem:[%s110]] %s109
    // Predicated region
    $region10: #{tim_loss_forward.2} parent=1 // pred_check
      _
    $region11: #{tim_loss_forward.2} parent=1 // pred_check_branch
      %113 = sbr.rel (0) target = $region13
    $region12: #{tim_loss_forward.2} parent=1 // pred_region
      %115 = vsyncadd [#allocation3], 0
      %s117 = sshll.u32 %s2, 4
      %s118 = int_to_ptr.hbm [resolvable:$true] %s117
      %120 = dma.smem_to_hbm [#allocation2], 16, %s118, [#allocation3]
    $region13: #{tim_loss_forward.2} parent=1 // pred_fallthru
      _
    // Predicated region
    $region14: #{tim_loss_forward.2} parent=1 // pred_check
      _
    $region15: #{tim_loss_forward.2} parent=1 // pred_check_branch
      %122 = sbr.rel (0) target = $region17
    $region16: #{tim_loss_forward.2} parent=1 // pred_region
      %124 = dma.done [#allocation3], 16
    $region17: #{tim_loss_forward.2} parent=1 // pred_fallthru
      _
    %125 = sfence
    %126 = vsyncpa [#allocation3], 1

</llo_original>
